<compile_context>
chip_gen: v7x
topology: tpu7x:2x2x1
jax: 0.10.0
libtpu: 0.0.40
codegen_flags: <defaults>
</compile_context>

<pallas_src>
import math

import jax
import jax.numpy as jnp
from jax.experimental import pallas as pl
from jax.experimental.pallas import tpu as pltpu


def decoder_kernel(x_ref, w_ref, b_ref, o_ref):
    # x_ref: (tm, G_in), w_ref: (G_in, G_out), b_ref: (1, G_out), o_ref: (tm, G_out)
    y = jnp.dot(x_ref[...], w_ref[...],
                preferred_element_type=jnp.float32) + b_ref[...]
    o_ref[...] = y.astype(o_ref.dtype)


def compose_affine(params):
    """Fold the four bias-carrying linear layers into one affine map.

    Weights in `params` are stored pre-transposed as (in_features, out_features),
    biases as (1, out_features), so composition is plain left-to-right matmuls.
    Amortize this per weight update (it is 4 tiny matmuls, independent of batch).
    """
    w1, w2, w3, w4 = params["w1"], params["w2"], params["w3"], params["w4"]
    b1, b2, b3, b4 = params["b1"], params["b2"], params["b3"], params["b4"]
    wc = ((w1 @ w2) @ w3) @ w4
    bc = ((b1 @ w2 + b2) @ w3 + b3) @ w4 + b4
    return wc, bc


def decoder_forward(x, params):
    """x: (B, G_in) float32.  Returns (B, G_out), matching the PyTorch forward."""
    wc, bc = compose_affine(params)

    B, G_in = x.shape
    G_out = wc.shape[1]

    # Tile the batch axis only when it is large enough to matter; otherwise use
    # the full array as a single block (full-extent dims satisfy the (8,128)
    # tiling rule regardless of size).
    tm = B if B <= 128 else 128
    grid = (pl.cdiv(B, tm),)

    return pl.pallas_call(
        decoder_kernel,
        out_shape=jax.ShapeDtypeStruct((B, G_out), x.dtype),
        grid=grid,
        in_specs=[
            pl.BlockSpec((tm, G_in), lambda i: (i, 0)),      # x tile (pipelined over B)
            pl.BlockSpec((G_in, G_out), lambda i: (0, 0)),   # composed weight, resident
            pl.BlockSpec((1, G_out), lambda i: (0, 0)),      # composed bias, resident
        ],
        out_specs=pl.BlockSpec((tm, G_out), lambda i: (i, 0)),
        compiler_params=pltpu.CompilerParams(
            dimension_semantics=("parallel",)),
    )(x, wc, bc)


def init_decoder_params(key, G_in, G_out, w1, w2, w3, dtype=jnp.float32):
    """Deterministic init mimicking PyTorch nn.Linear's U(-1/sqrt(fan_in), ...).

    Weights are stored pre-transposed as (in_features, out_features).
    Biases are stored as (1, out_features) for TPU-friendly 2D broadcasting.
    """
    dims = [(G_in, w1), (w1, w2), (w2, w3), (w3, G_out)]
    params = {}
    for idx, (fan_in, fan_out) in enumerate(dims, start=1):
        key, kw, kb = jax.random.split(key, 3)
        bound = 1.0 / math.sqrt(fan_in)
        params[f"w{idx}"] = jax.random.uniform(
            kw, (fan_in, fan_out), dtype, minval=-bound, maxval=bound)
        params[f"b{idx}"] = jax.random.uniform(
            kb, (1, fan_out), dtype, minval=-bound, maxval=bound)
    return params


def decoder_reference(x, params):
    # Layer-by-layer reference, matching the original PyTorch forward exactly.
    h = x @ params["w1"] + params["b1"]
    h = h @ params["w2"] + params["b2"]
    h = h @ params["w3"] + params["b3"]
    return h @ params["w4"] + params["b4"]


if __name__ == "__main__":
    # Small shapes consistent with the module's forward: a batch of flat vectors.
    B, G_in, W1, W2, W3, G_out = 8, 32, 64, 48, 40, 16

    key = jax.random.PRNGKey(0)
    key, kx = jax.random.split(key)
    x = jax.random.normal(kx, (B, G_in), dtype=jnp.float32)

    params = init_decoder_params(key, G_in, G_out, W1, W2, W3)

    y = decoder_forward(x, params)
    y = jax.block_until_ready(y)

    y_ref = decoder_reference(x, params)
    assert y.shape == (B, G_out), y.shape
    # Composition changes f32 accumulation order slightly vs. layer-by-layer;
    # differences stay well within 1e-4.
    assert jnp.allclose(y, y_ref, atol=1e-4, rtol=1e-4), "mismatch vs reference"

    print("KERNEL_OK")
</pallas_src>

<mosaic_0001>
module attributes {stable_mosaic.version = 11 : i64} {
  func.func @decoder_kernel(%arg0: i32, %arg1: memref<8x32xf32, #tpu.memory_space<vmem>>, %arg2: memref<32x16xf32, #tpu.memory_space<vmem>>, %arg3: memref<1x16xf32, #tpu.memory_space<vmem>>, %arg4: memref<8x16xf32, #tpu.memory_space<vmem>>) attributes {dimension_semantics = [#tpu.dimension_semantics<parallel>], iteration_bounds = array<i64: 1>, scalar_prefetch = 0 : i64, scratch_operands = 0 : i64, tpu.core_type = #tpu.core_type<tc>, window_params = [{transform_indices = @transform_0, window_bounds = array<i64: 8, 32>}, {pipeline_mode = #tpu.pipeline_mode<synchronous>, transform_indices = @transform_1, window_bounds = array<i64: 32, 16>}, {pipeline_mode = #tpu.pipeline_mode<synchronous>, transform_indices = @transform_2, window_bounds = array<i64: 1, 16>}, {transform_indices = @transform_3, window_bounds = array<i64: 8, 16>}]} {
    %c0 = arith.constant 0 : index
    %c0_0 = arith.constant 0 : index
    %0 = vector.load %arg1[%c0, %c0_0] : memref<8x32xf32, #tpu.memory_space<vmem>>, vector<8x32xf32>
    %c0_1 = arith.constant 0 : index
    %c0_2 = arith.constant 0 : index
    %1 = vector.load %arg2[%c0_1, %c0_2] : memref<32x16xf32, #tpu.memory_space<vmem>>, vector<32x16xf32>
    %cst = arith.constant dense<0.000000e+00> : vector<8x16xf32>
    %2 = tpu.matmul %0, %1, %cst {dimension_numbers = #tpu.dot_dimension_numbers<[1], [0], [0], [1], [0, 0, 1, 1], [], []>} : vector<8x32xf32>, vector<32x16xf32>, vector<8x16xf32> -> vector<8x16xf32>
    %c0_3 = arith.constant 0 : index
    %c0_4 = arith.constant 0 : index
    %3 = vector.load %arg3[%c0_3, %c0_4] : memref<1x16xf32, #tpu.memory_space<vmem>>, vector<1x16xf32>
    %4 = vector.broadcast %3 : vector<1x16xf32> to vector<8x16xf32>
    %5 = arith.addf %2, %4 : vector<8x16xf32>
    %c0_5 = arith.constant 0 : index
    %c0_6 = arith.constant 0 : index
    %6 = vector.load %arg4[%c0_5, %c0_6] : memref<8x16xf32, #tpu.memory_space<vmem>>, vector<8x16xf32>
    tpu.vector_store %arg4[%c0_5, %c0_6], %5 {strides = array<i32>} : memref<8x16xf32, #tpu.memory_space<vmem>>, vector<8x16xf32>,
    return
  }
  func.func @transform_0(%arg0: i32) -> (i32, i32) {
    %c0_i32 = arith.constant 0 : i32
    %c0_i32_0 = arith.constant 0 : i32
    return %arg0, %c0_i32 : i32, i32
  }
  func.func @transform_1(%arg0: i32) -> (i32, i32) {
    %c0_i32 = arith.constant 0 : i32
    %c0_i32_0 = arith.constant 0 : i32
    %c0_i32_1 = arith.constant 0 : i32
    return %c0_i32, %c0_i32_0 : i32, i32
  }
  func.func @transform_2(%arg0: i32) -> (i32, i32) {
    %c0_i32 = arith.constant 0 : i32
    %c0_i32_0 = arith.constant 0 : i32
    %c0_i32_1 = arith.constant 0 : i32
    return %c0_i32, %c0_i32_0 : i32, i32
  }
  func.func @transform_3(%arg0: i32) -> (i32, i32) {
    %c0_i32 = arith.constant 0 : i32
    %c0_i32_0 = arith.constant 0 : i32
    return %arg0, %c0_i32 : i32, i32
  }
}

</mosaic_0001>

<llo_original>
// kernel: tpu_custom_call.1
$region0: #{tpu_custom_call.1}
  #allocation0 [shape = 'u32[]', space=smem, size = 0x4, offset = 0x4, fixed_abs, tag = 'smem constant byte address 0x4 - core index']
  #allocation1 [shape = 'u32[144,128]{1,0:T(1,128)}', space=vmem, size = 0x12000, scoped, tag = 'internal scratch']
  %s0 = inlined_call_operand.vmem [shape: f32[8,32], index: 0, kind: input, shape index: {}]
  %s1 = inlined_call_operand.vmem [shape: f32[32,16], index: 1, kind: input, shape index: {}]
  %s2 = inlined_call_operand.vmem [shape: f32[1,16], index: 2, kind: input, shape index: {}]
  %s3 = inlined_call_operand.hbm [shape: f32[8,16], index: 3, kind: output, shape index: {}]
  %s4 = sld [smem:[#allocation0]]
  $region22: #{tpu_custom_call.1} parent=0
    _
  %s6 = ssub.s32 1, %s4
  %s7 = scalar_select 0, %s6, %s4
  $region1: #{tpu_custom_call.1} parent=0
    #allocation2 [shape = 'u8[4096]{0}', space=vmem, size = 0x1000, scoped, tag = 'output window, operand 0, single buffered']
    #allocation3 [shape = 's32[1]{0}', space=sflag, size = 0x4, scoped, tag = 'scoped memory for tpu_custom_call.1']
    %8 = vsyncpa [#allocation3], 0
    // Predicated region
    $region2: #{tpu_custom_call.1} parent=1 // pred_check
      _
    $region3: #{tpu_custom_call.1} parent=1 // pred_check_branch
      %10 = sbr.rel (0) target = $region5
    $region4: #{tpu_custom_call.1} parent=1 // pred_region
      _
    $region5: #{tpu_custom_call.1} parent=1 // pred_fallthru
      _
    // Predicated region
    $region6: #{tpu_custom_call.1} parent=1 // pred_check
      _
    $region7: #{tpu_custom_call.1} parent=1 // pred_check_branch
      %12 = sbr.rel (0) target = $region9
    $region8: #{tpu_custom_call.1} parent=1 // pred_region
      _
    $region9: #{tpu_custom_call.1} parent=1 // pred_fallthru
      _
    // Predicated region
    $region10: #{tpu_custom_call.1} parent=1 // pred_check
      _
    $region11: #{tpu_custom_call.1} parent=1 // pred_check_branch
      %14 = sbr.rel (0) target = $region13
    $region12: #{tpu_custom_call.1} parent=1 // pred_region
      _
    $region13: #{tpu_custom_call.1} parent=1 // pred_fallthru
      _
    %v15 = vld [vmem:[%s0] sm:$0xff]
    %v16 = vld [vmem:[%s1] sm:$0xff]
    %v17 = vld [vmem:[%s1 + $0x8] sm:$0xff]
    %v18 = vld [vmem:[%s1 + $0x10] sm:$0xff]
    %v19 = vld [vmem:[%s1 + $0x18] sm:$0xff]
    %v20 = vld [vmem:[%s2] sm:$0x1]
    %v22 = vlaneseq
    %v23 = vshrl.u32 %v22, 7
    %v24 = vsub.s32 0, %v23
    %v25 = vrot.slane %v20, %v24
    %vm27 = vcmask 261120
    %v29 = vsel %vm27, %v15, 0
    %31 = vmatprep.subr.mxu0 0.0
    %32 = vmatpush1.msra.mxu0 %v16
    %33 = vmatprep.subr.mxu0 0.0
    %34 = vmatpush1.msra.mxu0 %v17
    %35 = vmatprep.subr.mxu0 0.0
    %36 = vmatpush1.msra.mxu0 %v18
    %37 = vmatprep.subr.mxu0 0.0
    %38 = vmatpush1.msra.mxu0 %v19
    %39 = vmatprep.subr.mxu0 0.0
    %40 = vmatpush1.msra.mxu0 0.0
    %41 = vmatprep.subr.mxu0 0.0
    %42 = vmatpush1.msra.mxu0 0.0
    %43 = vmatprep.subr.mxu0 0.0
    %44 = vmatpush1.msra.mxu0 0.0
    %45 = vmatprep.subr.mxu0 0.0
    %46 = vmatpush1.msra.mxu0 0.0
    %47 = vmatprep.subr.mxu0 0.0
    %48 = vmatpush1.msra.mxu0 0.0
    %49 = vmatprep.subr.mxu0 0.0
    %50 = vmatpush1.msra.mxu0 0.0
    %51 = vmatprep.subr.mxu0 0.0
    %52 = vmatpush1.msra.mxu0 0.0
    %53 = vmatprep.subr.mxu0 0.0
    %54 = vmatpush1.msra.mxu0 0.0
    %55 = vmatprep.subr.mxu0 0.0
    %56 = vmatpush1.msra.mxu0 0.0
    %57 = vmatprep.subr.mxu0 0.0
    %58 = vmatpush1.msra.mxu0 0.0
    %59 = vmatprep.subr.mxu0 0.0
    %60 = vmatpush1.msra.mxu0 0.0
    %61 = vmatprep.subr.mxu0 0.0
    %62 = vmatpush1.msra.mxu0 0.0
    %63 = vmatprep.subr.mxu0 0.0
    %64 = vmatpush1.msra.mxu0 0.0
    %65 = vmatprep.subr.mxu0 0.0
    %66 = vmatpush1.msra.mxu0 0.0
    %67 = vmatprep.subr.mxu0 0.0
    %68 = vmatpush1.msra.mxu0 0.0
    %69 = vmatprep.subr.mxu0 0.0
    %70 = vmatpush1.msra.mxu0 0.0
    %71 = vmatprep.subr.mxu0 0.0
    %72 = vmatpush1.msra.mxu0 0.0
    %73 = vmatprep.subr.mxu0 0.0
    %74 = vmatpush1.msra.mxu0 0.0
    %75 = vmatprep.subr.mxu0 0.0
    %76 = vmatpush1.msra.mxu0 0.0
    %77 = vmatprep.subr.mxu0 0.0
    %78 = vmatpush1.msra.mxu0 0.0
    %79 = vmatprep.subr.mxu0 0.0
    %80 = vmatpush1.msra.mxu0 0.0
    %81 = vmatprep.subr.mxu0 0.0
    %82 = vmatpush1.msra.mxu0 0.0
    %83 = vmatprep.subr.mxu0 0.0
    %84 = vmatpush1.msra.mxu0 0.0
    %85 = vmatprep.subr.mxu0 0.0
    %86 = vmatpush1.msra.mxu0 0.0
    %87 = vmatprep.subr.mxu0 0.0
    %88 = vmatpush1.msra.mxu0 0.0
    %89 = vmatprep.subr.mxu0 0.0
    %90 = vmatpush1.msra.mxu0 0.0
    %91 = vmatprep.subr.mxu0 0.0
    %92 = vmatpush1.msra.mxu0 0.0
    %93 = vmatprep.subr.mxu0 0.0
    %94 = vmatpush1.msra.mxu0 0.0
    %95 = vmatprep.mubr.f32.mxu0 0.0
    %96 = vmatmul.mubr.f32.gmra.mrb[0].mxu0 %v29
    %v97 = vpop.f32.mrb[0].mxu0
    %v98 = vadd.f32 %v25, %v97
    %v99 = vpop.f32.mrb[0].mxu0
    %100 = vdwg.mxu0
    %vm101 = vcmask 130048
    %102 = vst.msk [vmem:[#allocation2] sm:$0xff] %vm101, %v98
    // Predicated region
    $region14: #{tpu_custom_call.1} parent=1 // pred_check
      _
    $region15: #{tpu_custom_call.1} parent=1 // pred_check_branch
      %104 = sbr.rel (0) target = $region17
    $region16: #{tpu_custom_call.1} parent=1 // pred_region
      %s106 = ssub.s32 128, 128
      %107 = vsyncadd [#allocation3], %s106
      %s109 = sshll.u32 [#allocation2], 4
      %s110 = int_to_ptr.vmem [resolvable:$true] %s109
      %112 = dma.vmem_to_hbm [thread:$0]  %s110, 128, %s3, [#allocation3]
    $region17: #{tpu_custom_call.1} parent=1 // pred_fallthru
      _
    // Predicated region
    $region18: #{tpu_custom_call.1} parent=1 // pred_check
      _
    $region19: #{tpu_custom_call.1} parent=1 // pred_check_branch
      %114 = sbr.rel (0) target = $region21
    $region20: #{tpu_custom_call.1} parent=1 // pred_region
      %115 = dma.done [#allocation3], 128
    $region21: #{tpu_custom_call.1} parent=1 // pred_fallthru
      _
    %116 = vsyncpa [#allocation3], 1

</llo_original>
